<compile_context>
chip_gen: v5e
topology: v5e:2x2
jax: 0.10.0
libtpu: 0.0.40
codegen_flags: <defaults>
</compile_context>

<pallas_src>
import functools

import jax
import jax.numpy as jnp
import numpy as np
from jax import lax
from jax.experimental import pallas as pl
from jax.experimental.pallas import tpu as pltpu

PAD_ID, CLS_ID, SEP_ID = 0, 101, 102


def _compiler_params():
    # Raise the scoped VMEM limit (v6e default is 32 MiB of 128 MiB physical);
    # cap at 3/4 of physical so the same code is safe on v7x (64 MiB).
    try:
        vmem_cap = pltpu.get_tpu_info().vmem_capacity_bytes
        vmem_limit = int(min(96 * 1024 * 1024, (vmem_cap * 3) // 4))
    except Exception:  # pragma: no cover - fall back to compiler default
        vmem_limit = None
    kwargs = dict(dimension_semantics=("parallel",))
    if vmem_limit is not None:
        kwargs["vmem_limit_bytes"] = vmem_limit
    return pltpu.CompilerParams(**kwargs)


# ----------------------------------------------------------------------------
# Inference kernel: align matrix (+ optional symmetric align probability).
# ----------------------------------------------------------------------------
def _guide_head_infer_kernel(softmax_threshold, with_prob,
                             hs_src_ref, hs_tgt_ref, bias_src_ref, bias_tgt_ref,
                             rls_ref, rlt_ref, align_ref, *prob_refs):
    q = hs_src_ref[0]                                   # (S_src, D) native dtype
    k = hs_tgt_ref[0]                                   # (S_tgt, D) native dtype
    # q @ k^T without materializing a transpose: contract the lane dim of both.
    scores = lax.dot_general(q, k, (((1,), (1,)), ((), ())),
                             preferred_element_type=jnp.float32)  # (S_src, S_tgt)

    scores_src = scores + bias_tgt_ref[0]               # mask over tgt columns
    scores_tgt = scores + bias_src_ref[0]               # mask over src rows

    row_max = jnp.max(scores_src, axis=-1, keepdims=True)   # (S_src, 1)
    col_max = jnp.max(scores_tgt, axis=0, keepdims=True)    # (1, S_tgt)
    d_src = scores_src - row_max
    d_tgt = scores_tgt - col_max

    e_src = jnp.exp(d_src)
    e_tgt = jnp.exp(d_tgt)
    # Align path: exact (non-approx) vector reciprocals so the threshold
    # comparison does not move; still no full-matrix divides.
    p_src = e_src * pl.reciprocal(jnp.sum(e_src, axis=-1, keepdims=True))
    p_tgt = e_tgt * pl.reciprocal(jnp.sum(e_tgt, axis=0, keepdims=True))

    align = jnp.logical_and(p_src > softmax_threshold, p_tgt > softmax_threshold)
    align_ref[0] = align.astype(jnp.int8)

    if with_prob:
        b = pl.program_id(0)
        r_t = rlt_ref[b]                                # 1/sqrt(len_tgt), SMEM scalar
        r_s = rls_ref[b]                                # 1/sqrt(len_src)
        # Length-scaled softmaxes reuse d_src / d_tgt (max(s*r) == r*max(s)).
        e_src_s = jnp.exp(d_src * r_t)
        e_tgt_s = jnp.exp(d_tgt * r_s)
        ps = e_src_s * pl.reciprocal(jnp.sum(e_src_s, axis=-1, keepdims=True),
                                     approx=True)
        pt = e_tgt_s * pl.reciprocal(jnp.sum(e_tgt_s, axis=0, keepdims=True),
                                     approx=True)
        prob_refs[0][0] = 2.0 * ps * pt * pl.reciprocal(ps + pt + 1e-9, approx=True)


def _guide_head_infer(hs_src, hs_tgt, bias_src, bias_tgt, rls, rlt,
                      softmax_threshold, with_prob):
    B, S_src, D = hs_src.shape
    S_tgt = hs_tgt.shape[1]
    kernel = functools.partial(_guide_head_infer_kernel, softmax_threshold,
                               with_prob)
    mat_spec = pl.BlockSpec((1, S_src, S_tgt), lambda b: (b, 0, 0))
    out_shape = [jax.ShapeDtypeStruct((B, S_src, S_tgt), jnp.int8)]   # align
    out_specs = [mat_spec]
    if with_prob:
        out_shape.append(jax.ShapeDtypeStruct((B, S_src, S_tgt), jnp.float32))
        out_specs.append(mat_spec)
    # TODO(synk): for very long sequences on v7x (64 MiB VMEM) / small B, add a
    # second parallel grid axis tiling S_src and make the src-axis softmax a
    # two-pass column reduction.
    # TODO(synk): production shapes should pad S_tgt to a multiple of 128 for
    # lane-dense (unmasked) output stores.
    return pl.pallas_call(
        kernel,
        out_shape=tuple(out_shape),
        grid_spec=pltpu.PrefetchScalarGridSpec(
            num_scalar_prefetch=0,
            grid=(B,),
            in_specs=[
                pl.BlockSpec((1, S_src, D), lambda b: (b, 0, 0)),   # hs_src
                pl.BlockSpec((1, S_tgt, D), lambda b: (b, 0, 0)),   # hs_tgt
                pl.BlockSpec((1, S_src, 1), lambda b: (b, 0, 0)),   # bias_src
                pl.BlockSpec((1, 1, S_tgt), lambda b: (b, 0, 0)),   # bias_tgt
                pl.BlockSpec(memory_space=pltpu.MemorySpace.SMEM),  # rls (B,)
                pl.BlockSpec(memory_space=pltpu.MemorySpace.SMEM),  # rlt (B,)
            ],
            out_specs=tuple(out_specs),
        ),
        compiler_params=_compiler_params(),
    )(hs_src, hs_tgt, bias_src, bias_tgt, rls, rlt)


# ----------------------------------------------------------------------------
# Training kernel: so/co loss reductions fused -- only per-batch scalars out.
# ----------------------------------------------------------------------------
def _guide_head_train_kernel(train_so, train_co,
                             hs_src_ref, hs_tgt_ref, bias_src_ref, bias_tgt_ref,
                             guide_ref, *out_refs):
    q = hs_src_ref[0]
    k = hs_tgt_ref[0]
    scores = lax.dot_general(q, k, (((1,), (1,)), ((), ())),
                             preferred_element_type=jnp.float32)
    scores_src = scores + bias_tgt_ref[0]
    scores_tgt = scores + bias_src_ref[0]

    d_src = scores_src - jnp.max(scores_src, axis=-1, keepdims=True)
    d_tgt = scores_tgt - jnp.max(scores_tgt, axis=0, keepdims=True)
    e_src = jnp.exp(d_src)
    e_tgt = jnp.exp(d_tgt)
    p_src = e_src * pl.reciprocal(jnp.sum(e_src, axis=-1, keepdims=True),
                                  approx=True)
    p_tgt = e_tgt * pl.reciprocal(jnp.sum(e_tgt, axis=0, keepdims=True),
                                  approx=True)

    def full_sum(x):  # (S_src, S_tgt) -> (1, 1)
        return jnp.sum(jnp.sum(x, axis=-1, keepdims=True), axis=0, keepdims=True)

    i = 0
    if train_so:
        g = guide_ref[0]
        out_refs[i][0] = full_sum(p_src * g)      # sum(probs_src * guide)
        out_refs[i + 1][0] = full_sum(p_tgt * g)  # sum(probs_tgt * guide)
        i += 2
    if train_co:
        # trace(probs_src @ probs_tgt^T) == sum(probs_src * probs_tgt)
        out_refs[i][0] = full_sum(p_src * p_tgt)


def _guide_head_train(hs_src, hs_tgt, bias_src, bias_tgt, guide,
                      train_so, train_co):
    B, S_src, D = hs_src.shape
    S_tgt = hs_tgt.shape[1]
    kernel = functools.partial(_guide_head_train_kernel, train_so, train_co)
    n_out = (2 if train_so else 0) + (1 if train_co else 0)
    scalar_spec = pl.BlockSpec((1, 1, 1), lambda b: (b, 0, 0))
    return pl.pallas_call(
        kernel,
        out_shape=tuple(jax.ShapeDtypeStruct((B, 1, 1), jnp.float32)
                        for _ in range(n_out)),
        grid_spec=pltpu.PrefetchScalarGridSpec(
            num_scalar_prefetch=0,
            grid=(B,),
            in_specs=[
                pl.BlockSpec((1, S_src, D), lambda b: (b, 0, 0)),     # hs_src
                pl.BlockSpec((1, S_tgt, D), lambda b: (b, 0, 0)),     # hs_tgt
                pl.BlockSpec((1, S_src, 1), lambda b: (b, 0, 0)),     # bias_src
                pl.BlockSpec((1, 1, S_tgt), lambda b: (b, 0, 0)),     # bias_tgt
                pl.BlockSpec((1, S_src, S_tgt), lambda b: (b, 0, 0)),  # guide
            ],
            out_specs=tuple(scalar_spec for _ in range(n_out)),
        ),
        compiler_params=_compiler_params(),
    )(hs_src, hs_tgt, bias_src, bias_tgt, guide)


# ----------------------------------------------------------------------------
# GuideHead.forward equivalent (glue: mask / length prep, scalar loss combine).
# ----------------------------------------------------------------------------
def guide_head_forward(hidden_states_src, hidden_states_tgt,
                       inputs_src, inputs_tgt,
                       pad_id=PAD_ID, cls_id=CLS_ID, sep_id=SEP_ID,
                       guide=None, extraction='softmax',
                       softmax_threshold=0.001,
                       train_so=True, train_co=False, output_prob=False):
    assert extraction == 'softmax'
    B, S_src, _ = hidden_states_src.shape

    def special_mask(ids):
        return jnp.logical_or(jnp.logical_or(ids == pad_id, ids == cls_id),
                              ids == sep_id).astype(jnp.float32)

    is_sp_src = special_mask(inputs_src)                       # [B, S_src]
    is_sp_tgt = special_mask(inputs_tgt)                       # [B, S_tgt]
    len_src = jnp.sum(1.0 - is_sp_src, axis=-1)                # [B]
    len_tgt = jnp.sum(1.0 - is_sp_tgt, axis=-1)                # [B]

    bias_src = (is_sp_src * -10000.0)[:, :, None]              # [B, S_src, 1]
    bias_tgt = (is_sp_tgt * -10000.0)[:, None, :]              # [B, 1, S_tgt]
    # TODO(synk): len==0 (all special tokens) gives inf here -> NaNs, same as
    # the torch original.
    rls = 1.0 / jnp.sqrt(len_src)                              # [B]
    rlt = 1.0 / jnp.sqrt(len_tgt)                              # [B]

    if guide is None:
        outs = _guide_head_infer(hidden_states_src, hidden_states_tgt,
                                 bias_src, bias_tgt, rls, rlt,
                                 softmax_threshold, output_prob)
        align_matrix = (outs[0] != 0)[:, None, :, :]           # [B,1,S,S] bool
        if not output_prob:
            return align_matrix
        return align_matrix, outs[1][:, None, :, :]

    if not train_so and not train_co:
        return jnp.float32(0.0)

    partials = _guide_head_train(hidden_states_src, hidden_states_tgt,
                                 bias_src, bias_tgt,
                                 guide[:, 0].astype(jnp.float32),
                                 train_so, train_co)
    partials = [p.reshape(B) for p in partials]

    so_loss = 0.0
    idx = 0
    if train_so:
        so_loss = -jnp.mean(partials[0] / len_src + partials[1] / len_tgt)
        idx = 2
    co_loss = 0.0
    if train_co:
        co_loss = -jnp.mean(partials[idx] / jnp.minimum(len_src, len_tgt))
    return so_loss + co_loss


# ----------------------------------------------------------------------------
# Pure-JAX reference (mirrors the torch code) for validation.
# ----------------------------------------------------------------------------
def _reference(hs_src, hs_tgt, inputs_src, inputs_tgt, thr=0.001):
    def special_mask(ids):
        return ((ids == PAD_ID) | (ids == CLS_ID) | (ids == SEP_ID)).astype(jnp.float32)

    sp_s, sp_t = special_mask(inputs_src), special_mask(inputs_tgt)
    len_s = jnp.sum(1 - sp_s, -1)
    len_t = jnp.sum(1 - sp_t, -1)
    mask_s = (sp_s * -10000.0)[:, None, None, :]
    mask_t = (sp_t * -10000.0)[:, None, None, :]
    q = hs_src[:, None].astype(jnp.float32)
    k = hs_tgt[:, None].astype(jnp.float32)
    scores = q @ jnp.swapaxes(k, -1, -2)
    ss = scores + mask_t
    st = scores + jnp.swapaxes(mask_s, -1, -2)
    ps = jax.nn.softmax(ss, -1)
    pt = jax.nn.softmax(st, -2)
    align = (ps > thr) & (pt > thr)
    ps2 = jax.nn.softmax(ss / jnp.sqrt(len_t).reshape(-1, 1, 1, 1), -1)
    pt2 = jax.nn.softmax(st / jnp.sqrt(len_s).reshape(-1, 1, 1, 1), -2)
    prob = 2 * ps2 * pt2 / (ps2 + pt2 + 1e-9)
    return align, prob, ps, pt, len_s, len_t


if __name__ == "__main__":
    key = jax.random.PRNGKey(0)
    B, S, D = 2, 8, 32
    k1, k2 = jax.random.split(key)
    hs_src = jax.random.normal(k1, (B, S, D), dtype=jnp.float32)
    hs_tgt = jax.random.normal(k2, (B, S, D), dtype=jnp.float32)
    inputs_src = jnp.array([[101, 5, 6, 7, 8, 102, 0, 0],
                            [101, 9, 10, 102, 0, 0, 0, 0]], dtype=jnp.int32)
    inputs_tgt = jnp.array([[101, 11, 12, 13, 102, 0, 0, 0],
                            [101, 14, 15, 16, 17, 18, 102, 0]], dtype=jnp.int32)

    # inference: align only (single int8 output)
    align_only = guide_head_forward(hs_src, hs_tgt, inputs_src, inputs_tgt,
                                    output_prob=False)
    # inference: align + symmetric align probability
    align, align_prob = guide_head_forward(hs_src, hs_tgt, inputs_src, inputs_tgt,
                                           output_prob=True)
    jax.block_until_ready((align_only, align, align_prob))

    # training: fused so + co loss reductions
    guide = (jax.random.uniform(jax.random.PRNGKey(1), (B, 1, S, S)) > 0.8
             ).astype(jnp.float32)
    loss = guide_head_forward(hs_src, hs_tgt, inputs_src, inputs_tgt,
                              guide=guide, train_so=True, train_co=True)
    jax.block_until_ready(loss)

    # validate against a plain-JAX reference of the torch forward
    ref_align, ref_prob, ref_ps, ref_pt, len_s, len_t = _reference(
        hs_src, hs_tgt, inputs_src, inputs_tgt)
    np.testing.assert_array_equal(np.asarray(align_only), np.asarray(ref_align))
    np.testing.assert_array_equal(np.asarray(align), np.asarray(ref_align))
    np.testing.assert_allclose(np.asarray(align_prob), np.asarray(ref_prob),
                               rtol=2e-2, atol=1e-5)

    so_src = jnp.sum(ref_ps * guide, axis=(-1, -2)).reshape(-1)
    so_tgt = jnp.sum(ref_pt * guide, axis=(-1, -2)).reshape(-1)
    ref_so = -jnp.mean(so_src / len_s + so_tgt / len_t)
    trace = jnp.sum(ref_ps[:, 0] * ref_pt[:, 0], axis=(-1, -2))
    ref_co = -jnp.mean(trace / jnp.minimum(len_s, len_t))
    np.testing.assert_allclose(np.asarray(loss), np.asarray(ref_so + ref_co),
                               rtol=1e-2, atol=1e-5)

    # bf16 smoke test: native-dtype operands go straight to the MXU
    align_bf16 = guide_head_forward(hs_src.astype(jnp.bfloat16),
                                    hs_tgt.astype(jnp.bfloat16),
                                    inputs_src, inputs_tgt, output_prob=False)
    jax.block_until_ready(align_bf16)

    print("KERNEL_OK")
</pallas_src>

<mosaic_0001>
module attributes {stable_mosaic.version = 11 : i64} {
  func.func @_guide_head_infer_kernel(%arg0: i32, %arg1: memref<1x8x32xf32, #tpu.memory_space<vmem>>, %arg2: memref<1x8x32xf32, #tpu.memory_space<vmem>>, %arg3: memref<1x8x1xf32, #tpu.memory_space<vmem>>, %arg4: memref<1x1x8xf32, #tpu.memory_space<vmem>>, %arg5: memref<2xf32, #tpu.memory_space<smem>>, %arg6: memref<2xf32, #tpu.memory_space<smem>>, %arg7: memref<1x8x8xi8, #tpu.memory_space<vmem>>) attributes {dimension_semantics = [#tpu.dimension_semantics<parallel>], iteration_bounds = array<i64: 2>, scalar_prefetch = 0 : i64, scratch_operands = 0 : i64, tpu.core_type = #tpu.core_type<tc>, window_params = [{transform_indices = @transform_0, window_bounds = array<i64: 1, 8, 32>}, {transform_indices = @transform_1, window_bounds = array<i64: 1, 8, 32>}, {transform_indices = @transform_2, window_bounds = array<i64: 1, 8, 1>}, {transform_indices = @transform_3, window_bounds = array<i64: 1, 1, 8>}, {transform_indices = @transform_4, window_bounds = array<i64: 2>}, {transform_indices = @transform_5, window_bounds = array<i64: 2>}, {transform_indices = @transform_6, window_bounds = array<i64: 1, 8, 8>}]} {
    %c0 = arith.constant 0 : index
    %c0_0 = arith.constant 0 : index
    %c0_1 = arith.constant 0 : index
    %0 = vector.load %arg1[%c0, %c0_0, %c0_1] : memref<1x8x32xf32, #tpu.memory_space<vmem>>, vector<1x8x32xf32>
    %1 = vector.shape_cast %0 : vector<1x8x32xf32> to vector<8x32xf32>
    %c0_2 = arith.constant 0 : index
    %c0_3 = arith.constant 0 : index
    %c0_4 = arith.constant 0 : index
    %2 = vector.load %arg2[%c0_2, %c0_3, %c0_4] : memref<1x8x32xf32, #tpu.memory_space<vmem>>, vector<1x8x32xf32>
    %3 = vector.shape_cast %2 : vector<1x8x32xf32> to vector<8x32xf32>
    %cst = arith.constant dense<0.000000e+00> : vector<8x8xf32>
    %4 = tpu.matmul %1, %3, %cst {dimension_numbers = #tpu.dot_dimension_numbers<[1], [1], [0], [0], [0, 0, 1, 0], [], []>} : vector<8x32xf32>, vector<8x32xf32>, vector<8x8xf32> -> vector<8x8xf32>
    %c0_5 = arith.constant 0 : index
    %c0_6 = arith.constant 0 : index
    %c0_7 = arith.constant 0 : index
    %5 = vector.load %arg4[%c0_5, %c0_6, %c0_7] : memref<1x1x8xf32, #tpu.memory_space<vmem>>, vector<1x1x8xf32>
    %6 = vector.shape_cast %5 : vector<1x1x8xf32> to vector<1x8xf32>
    %7 = vector.broadcast %6 : vector<1x8xf32> to vector<8x8xf32>
    %8 = arith.addf %4, %7 : vector<8x8xf32>
    %c0_8 = arith.constant 0 : index
    %c0_9 = arith.constant 0 : index
    %c0_10 = arith.constant 0 : index
    %9 = vector.load %arg3[%c0_8, %c0_9, %c0_10] : memref<1x8x1xf32, #tpu.memory_space<vmem>>, vector<1x8x1xf32>
    %10 = vector.shape_cast %9 : vector<1x8x1xf32> to vector<8x1xf32>
    %11 = vector.broadcast %10 : vector<8x1xf32> to vector<8x8xf32>
    %12 = arith.addf %4, %11 : vector<8x8xf32>
    %cst_11 = arith.constant dense<0xFF800000> : vector<8xf32>
    %13 = vector.multi_reduction <maximumf>, %8, %cst_11 [1] : vector<8x8xf32> to vector<8xf32>
    %14 = vector.shape_cast %13 : vector<8xf32> to vector<8x1xf32>
    %cst_12 = arith.constant dense<0xFF800000> : vector<8xf32>
    %15 = vector.multi_reduction <maximumf>, %12, %cst_12 [0] : vector<8x8xf32> to vector<8xf32>
    %16 = vector.shape_cast %15 : vector<8xf32> to vector<1x8xf32>
    %17 = vector.broadcast %14 : vector<8x1xf32> to vector<8x8xf32>
    %18 = arith.subf %8, %17 : vector<8x8xf32>
    %19 = vector.broadcast %16 : vector<1x8xf32> to vector<8x8xf32>
    %20 = arith.subf %12, %19 : vector<8x8xf32>
    %21 = math.exp %18 : vector<8x8xf32>
    %22 = math.exp %20 : vector<8x8xf32>
    %cst_13 = arith.constant dense<0.000000e+00> : vector<8xf32>
    %23 = vector.multi_reduction <add>, %21, %cst_13 [1] : vector<8x8xf32> to vector<8xf32>
    %24 = vector.shape_cast %23 : vector<8xf32> to vector<8x1xf32>
    %25 = tpu.reciprocal %24 : vector<8x1xf32> -> vector<8x1xf32>
    %26 = vector.broadcast %25 : vector<8x1xf32> to vector<8x8xf32>
    %27 = arith.mulf %21, %26 : vector<8x8xf32>
    %cst_14 = arith.constant dense<0.000000e+00> : vector<8xf32>
    %28 = vector.multi_reduction <add>, %22, %cst_14 [0] : vector<8x8xf32> to vector<8xf32>
    %29 = vector.shape_cast %28 : vector<8xf32> to vector<1x8xf32>
    %30 = tpu.reciprocal %29 : vector<1x8xf32> -> vector<1x8xf32>
    %31 = vector.broadcast %30 : vector<1x8xf32> to vector<8x8xf32>
    %32 = arith.mulf %22, %31 : vector<8x8xf32>
    %cst_15 = arith.constant 1.000000e-03 : f32
    %33 = vector.broadcast %cst_15 : f32 to vector<8x8xf32>
    %34 = arith.cmpf ogt, %27, %33 : vector<8x8xf32>
    %cst_16 = arith.constant 1.000000e-03 : f32
    %35 = vector.broadcast %cst_16 : f32 to vector<8x8xf32>
    %36 = arith.cmpf ogt, %32, %35 : vector<8x8xf32>
    %37 = arith.andi %34, %36 : vector<8x8xi1>
    %38 = arith.extui %37 : vector<8x8xi1> to vector<8x8xi8>
    %c0_17 = arith.constant 0 : index
    %c0_18 = arith.constant 0 : index
    %c0_19 = arith.constant 0 : index
    %39 = vector.load %arg7[%c0_17, %c0_18, %c0_19] : memref<1x8x8xi8, #tpu.memory_space<vmem>>, vector<1x8x8xi8>
    %40 = vector.shape_cast %39 : vector<1x8x8xi8> to vector<8x8xi8>
    %41 = vector.shape_cast %38 : vector<8x8xi8> to vector<1x8x8xi8>
    tpu.vector_store %arg7[%c0_17, %c0_18, %c0_19], %41 {strides = array<i32>} : memref<1x8x8xi8, #tpu.memory_space<vmem>>, vector<1x8x8xi8>,
    return
  }
  func.func @transform_0(%arg0: i32) -> (i32, i32, i32) {
    %c0_i32 = arith.constant 0 : i32
    %c0_i32_0 = arith.constant 0 : i32
    %c0_i32_1 = arith.constant 0 : i32
    return %arg0, %c0_i32, %c0_i32_0 : i32, i32, i32
  }
  func.func @transform_1(%arg0: i32) -> (i32, i32, i32) {
    %c0_i32 = arith.constant 0 : i32
    %c0_i32_0 = arith.constant 0 : i32
    %c0_i32_1 = arith.constant 0 : i32
    return %arg0, %c0_i32, %c0_i32_0 : i32, i32, i32
  }
  func.func @transform_2(%arg0: i32) -> (i32, i32, i32) {
    %c0_i32 = arith.constant 0 : i32
    %c0_i32_0 = arith.constant 0 : i32
    %c0_i32_1 = arith.constant 0 : i32
    return %arg0, %c0_i32, %c0_i32_0 : i32, i32, i32
  }
  func.func @transform_3(%arg0: i32) -> (i32, i32, i32) {
    %c0_i32 = arith.constant 0 : i32
    %c0_i32_0 = arith.constant 0 : i32
    %c0_i32_1 = arith.constant 0 : i32
    return %arg0, %c0_i32, %c0_i32_0 : i32, i32, i32
  }
  func.func @transform_4(%arg0: i32) -> i32 {
    %c0_i32 = arith.constant 0 : i32
    %c0_i32_0 = arith.constant 0 : i32
    return %c0_i32 : i32
  }
  func.func @transform_5(%arg0: i32) -> i32 {
    %c0_i32 = arith.constant 0 : i32
    %c0_i32_0 = arith.constant 0 : i32
    return %c0_i32 : i32
  }
  func.func @transform_6(%arg0: i32) -> (i32, i32, i32) {
    %c0_i32 = arith.constant 0 : i32
    %c0_i32_0 = arith.constant 0 : i32
    %c0_i32_1 = arith.constant 0 : i32
    return %arg0, %c0_i32, %c0_i32_0 : i32, i32, i32
  }
}

</mosaic_0001>

<llo_original>
// kernel: tpu_custom_call.1
$region0: #{tpu_custom_call.1}
  #allocation0 [shape = 'u32[]', space=smem, size = 0x4, offset = 0x4, fixed_abs, tag = 'smem constant byte address 0x4 - core index']
  #allocation1 [shape = 'u32[72,128]{1,0:T(1,128)}', space=vmem, size = 0x9000, scoped, tag = 'internal scratch']
  %s0 = inlined_call_operand.vmem [shape: f32[2,8,32], index: 0, kind: input, shape index: {}]
  %s1 = inlined_call_operand.hbm [shape: f32[2,8,32], index: 1, kind: input, shape index: {}]
  %s2 = inlined_call_operand.vmem [shape: f32[2,8,1], index: 2, kind: input, shape index: {}]
  %s3 = inlined_call_operand.vmem [shape: f32[2,1,8], index: 3, kind: input, shape index: {}]
  %s4 = inlined_call_operand.vmem [shape: f32[2], index: 4, kind: input, shape index: {}]
  %s5 = inlined_call_operand.vmem [shape: f32[2], index: 5, kind: input, shape index: {}]
  %s6 = inlined_call_operand.hbm [shape: s8[2,8,8], index: 6, kind: output, shape index: {}]
  %s7 = sld [smem:[#allocation0]]
  $region69: #{tpu_custom_call.1} parent=0
    _
  %s9 = ssub.s32 1, %s7
  %s10 = scalar_select 0, %s9, %s7
  $region1: #{tpu_custom_call.1} parent=0
    #allocation2 [shape = 'u8[8192]{0}', space=vmem, size = 0x2000, scoped, tag = 'input window, operand 1']
    #allocation3 [shape = 's32[2]{0}', space=sflag, size = 0x8, scoped, tag = 'scoped memory for tpu_custom_call.1']
    #allocation4 [shape = 's32[2]{0}', space=sflag, size = 0x8, scoped, tag = 'scoped memory for tpu_custom_call.1']
    #allocation5 [shape = 's32[2]{0}', space=sflag, size = 0x8, scoped, tag = 'scoped memory for tpu_custom_call.1']
    #allocation6 [shape = 'u8[512]{0}', space=smem, size = 0x200, scoped, tag = 'input window, operand 4, single buffered']
    #allocation7 [shape = 'u8[512]{0}', space=smem, size = 0x200, scoped, tag = 'input window, operand 5, single buffered']
    #allocation8 [shape = 's32[1]{0}', space=sflag, size = 0x4, scoped, tag = 'scoped memory for tpu_custom_call.1']
    #allocation9 [shape = 'u8[2048]{0}', space=vmem, size = 0x800, scoped, tag = 'output window, operand 0']
    %11 = vsyncpa [#allocation3], 0
    %s12 = scalar_lea.sflag [#allocation3], 1
    %13 = vsyncpa %s12, 0
    %14 = vsyncpa [#allocation5], 0
    %15 = vsyncpa [#allocation8], 0
    %16 = vsyncpa [#allocation4], 0
    %s17 = scalar_lea.sflag [#allocation4], 1
    %18 = vsyncpa %s17, 0
    loop: start=0, step=1, limit=4
    $region2: #{tpu_custom_call.1} parent=1 // loop_pre_header
      _
    $region3: #{tpu_custom_call.1} parent=1 // loop_header
      %s20 = sphi 0, %s24
      %p21 = scmp.ge.s32.totalorder %s20, 4
      %s30 = sphi 0, %s32
      %s33 = sphi 0, %s30
      %s34 = sphi 0, %s33
      %s50 = sphi 0, %s34
      %s56 = sphi 0, %s58
      %s59 = sphi 0, %s56
      %s60 = sphi 0, %s59
      %s76 = sphi 0, %s60
      %s82 = sphi 0, %s84
      %s85 = sphi 0, %s82
      %s86 = sphi 0, %s85
      %s102 = sphi 0, %s86
      %s108 = sphi 0, %s110
      %s111 = sphi 0, %s108
      %s112 = sphi 0, %s111
      %s128 = sphi 0, %s112
      %s132 = sphi 0, %s132
      %s134 = sphi 0, %s132
      %s135 = sphi 0, %s134
      %s149 = sphi 0, %s135
      %s153 = sphi 0, %s153
      %s155 = sphi 0, %s153
      %s156 = sphi 0, %s155
      %s170 = sphi 0, %s156
      %s176 = sphi 0, %s178
      %s179 = sphi 0, %s176
      %s180 = sphi 0, %s179
      %s196 = sphi 0, %s180
    $region4: #{tpu_custom_call.1} parent=1 // loop_header_branch
      %23 = sbr.rel (%p21) target = $region8
    $region5: #{tpu_custom_call.1} parent=1 // loop_body
      %s25 = ssub.s32 %s20, 1
      %s26 = ssub.s32 %s20, 2
      %s27 = sadd.s32 %s20, 1
      %s28 = ssub.s32 %s20, %s27
      %p29 = scmp.eq.s32.totalorder %s28, 0
      %s31 = sadd.s32 %s30, 1
      %s32 = scalar_select %p29, %s30, %s31
      %p35 = pneg %p29
      %p36 = scmp.eq.s32.totalorder %s20, 1
      %p37 = por %p35, %p36
      %p38 = scmp.ne.s32.totalorder %s30, %s33
      %p39 = scmp.eq.s32.totalorder %s20, 0
      %p40 = por %p38, %p39
      %p41 = scmp.ne.s32.totalorder %s30, %s33
      %p42 = scmp.eq.s32.totalorder %s25, 1
      %p43 = por %p41, %p42
      %p44 = scmp.ne.s32.totalorder %s33, %s34
      %p45 = scmp.eq.s32.totalorder %s25, 0
      %p46 = por %p44, %p45
      %p47 = scmp.ne.s32.totalorder %s33, %s34
      %p48 = scmp.eq.s32.totalorder %s26, 1
      %p49 = por %p47, %p48
      %p51 = scmp.ne.s32.totalorder %s34, %s50
      %p52 = scmp.eq.s32.totalorder %s26, 0
      %p53 = por %p51, %p52
      %s54 = ssub.s32 %s20, %s27
      %p55 = scmp.eq.s32.totalorder %s54, 0
      %s57 = sadd.s32 %s56, 1
      %s58 = scalar_select %p55, %s56, %s57
      %p61 = pneg %p55
      %p62 = scmp.eq.s32.totalorder %s20, 1
      %p63 = por %p61, %p62
      %p64 = scmp.ne.s32.totalorder %s56, %s59
      %p65 = scmp.eq.s32.totalorder %s20, 0
      %p66 = por %p64, %p65
      %p67 = scmp.ne.s32.totalorder %s56, %s59
      %p68 = scmp.eq.s32.totalorder %s25, 1
      %p69 = por %p67, %p68
      %p70 = scmp.ne.s32.totalorder %s59, %s60
      %p71 = scmp.eq.s32.totalorder %s25, 0
      %p72 = por %p70, %p71
      %p73 = scmp.ne.s32.totalorder %s59, %s60
      %p74 = scmp.eq.s32.totalorder %s26, 1
      %p75 = por %p73, %p74
      %p77 = scmp.ne.s32.totalorder %s60, %s76
      %p78 = scmp.eq.s32.totalorder %s26, 0
      %p79 = por %p77, %p78
      %s80 = ssub.s32 %s20, %s27
      %p81 = scmp.eq.s32.totalorder %s80, 0
      %s83 = sadd.s32 %s82, 1
      %s84 = scalar_select %p81, %s82, %s83
      %p87 = pneg %p81
      %p88 = scmp.eq.s32.totalorder %s20, 1
      %p89 = por %p87, %p88
      %p90 = scmp.ne.s32.totalorder %s82, %s85
      %p91 = scmp.eq.s32.totalorder %s20, 0
      %p92 = por %p90, %p91
      %p93 = scmp.ne.s32.totalorder %s82, %s85
      %p94 = scmp.eq.s32.totalorder %s25, 1
      %p95 = por %p93, %p94
      %p96 = scmp.ne.s32.totalorder %s85, %s86
      %p97 = scmp.eq.s32.totalorder %s25, 0
      %p98 = por %p96, %p97
      %p99 = scmp.ne.s32.totalorder %s85, %s86
      %p100 = scmp.eq.s32.totalorder %s26, 1
      %p101 = por %p99, %p100
      %p103 = scmp.ne.s32.totalorder %s86, %s102
      %p104 = scmp.eq.s32.totalorder %s26, 0
      %p105 = por %p103, %p104
      %s106 = ssub.s32 %s20, %s27
      %p107 = scmp.eq.s32.totalorder %s106, 0
      %s109 = sadd.s32 %s108, 1
      %s110 = scalar_select %p107, %s108, %s109
      %p113 = pneg %p107
      %p114 = scmp.eq.s32.totalorder %s20, 1
      %p115 = por %p113, %p114
      %p116 = scmp.ne.s32.totalorder %s108, %s111
      %p117 = scmp.eq.s32.totalorder %s20, 0
      %p118 = por %p116, %p117
      %p119 = scmp.ne.s32.totalorder %s108, %s111
      %p120 = scmp.eq.s32.totalorder %s25, 1
      %p121 = por %p119, %p120
      %p122 = scmp.ne.s32.totalorder %s111, %s112
      %p123 = scmp.eq.s32.totalorder %s25, 0
      %p124 = por %p122, %p123
      %p125 = scmp.ne.s32.totalorder %s111, %s112
      %p126 = scmp.eq.s32.totalorder %s26, 1
      %p127 = por %p125, %p126
      %p129 = scmp.ne.s32.totalorder %s112, %s128
      %p130 = scmp.eq.s32.totalorder %s26, 0
      %p131 = por %p129, %p130
      %s133 = sadd.s32 %s132, 1
      %p136 = scmp.eq.s32.totalorder %s20, 1
      %p137 = scmp.ne.s32.totalorder %s132, %s134
      %p138 = scmp.eq.s32.totalorder %s20, 0
      %p139 = por %p137, %p138
      %p140 = scmp.ne.s32.totalorder %s132, %s134
      %p141 = scmp.eq.s32.totalorder %s25, 1
      %p142 = por %p140, %p141
      %p143 = scmp.ne.s32.totalorder %s134, %s135
      %p144 = scmp.eq.s32.totalorder %s25, 0
      %p145 = por %p143, %p144
      %p146 = scmp.ne.s32.totalorder %s134, %s135
      %p147 = scmp.eq.s32.totalorder %s26, 1
      %p148 = por %p146, %p147
      %p150 = scmp.ne.s32.totalorder %s135, %s149
      %p151 = scmp.eq.s32.totalorder %s26, 0
      %p152 = por %p150, %p151
      %s154 = sadd.s32 %s153, 1
      %p157 = scmp.eq.s32.totalorder %s20, 1
      %p158 = scmp.ne.s32.totalorder %s153, %s155
      %p159 = scmp.eq.s32.totalorder %s20, 0
      %p160 = por %p158, %p159
      %p161 = scmp.ne.s32.totalorder %s153, %s155
      %p162 = scmp.eq.s32.totalorder %s25, 1
      %p163 = por %p161, %p162
      %p164 = scmp.ne.s32.totalorder %s155, %s156
      %p165 = scmp.eq.s32.totalorder %s25, 0
      %p166 = por %p164, %p165
      %p167 = scmp.ne.s32.totalorder %s155, %s156
      %p168 = scmp.eq.s32.totalorder %s26, 1
      %p169 = por %p167, %p168
      %p171 = scmp.ne.s32.totalorder %s156, %s170
      %p172 = scmp.eq.s32.totalorder %s26, 0
      %p173 = por %p171, %p172
      %s174 = ssub.s32 %s20, %s27
      %p175 = scmp.eq.s32.totalorder %s174, 0
      %s177 = sadd.s32 %s176, 1
      %s178 = scalar_select %p175, %s176, %s177
      %p181 = pneg %p175
      %p182 = scmp.eq.s32.totalorder %s20, 1
      %p183 = por %p181, %p182
      %p184 = scmp.ne.s32.totalorder %s176, %s179
      %p185 = scmp.eq.s32.totalorder %s20, 0
      %p186 = por %p184, %p185
      %p187 = scmp.ne.s32.totalorder %s176, %s179
      %p188 = scmp.eq.s32.totalorder %s25, 1
      %p189 = por %p187, %p188
      %p190 = scmp.ne.s32.totalorder %s179, %s180
      %p191 = scmp.eq.s32.totalorder %s25, 0
      %p192 = por %p190, %p191
      %p193 = scmp.ne.s32.totalorder %s179, %s180
      %p194 = scmp.eq.s32.totalorder %s26, 1
      %p195 = por %p193, %p194
      %p197 = scmp.ne.s32.totalorder %s180, %s196
      %p198 = scmp.eq.s32.totalorder %s26, 0
      %p199 = por %p197, %p198
      %p200 = scmp.le.s32.totalorder 1, %s20
      %p201 = scmp.lt.s32.totalorder %s20, 3
      %p202 = pnand %p200, %p201
      %p203 = pneg %p202
      // Predicated region
      $region9: #{tpu_custom_call.1} parent=5 // pred_check
        _
      $region10: #{tpu_custom_call.1} parent=5 // pred_check_branch
        %205 = sbr.rel (%p202) target = $region12
      $region11: #{tpu_custom_call.1} parent=5 // pred_region
        %s206 = ssub.s32 %s20, 1
        // Predicated region
        $region13: #{tpu_custom_call.1} parent=11 // pred_check
          %p207 = pneg %p145
        $region14: #{tpu_custom_call.1} parent=11 // pred_check_branch
          %209 = sbr.rel (%p207) target = $region16
        $region15: #{tpu_custom_call.1} parent=11 // pred_region
          %211 = vsyncadd [#allocation5], 0
          %s213 = sshll.u32 %s4, 4
          %s214 = int_to_ptr.vmem [resolvable:$true] %s213
          %216 = dma.vmem_to_smem %s214, 16, [#allocation6], [#allocation5]
        $region16: #{tpu_custom_call.1} parent=11 // pred_fallthru
          _
        // Predicated region
        $region17: #{tpu_custom_call.1} parent=11 // pred_check
          %p217 = pneg %p166
        $region18: #{tpu_custom_call.1} parent=11 // pred_check_branch
          %219 = sbr.rel (%p217) target = $region20
        $region19: #{tpu_custom_call.1} parent=11 // pred_region
          %221 = vsyncadd [#allocation8], 0
          %s223 = sshll.u32 %s5, 4
          %s224 = int_to_ptr.vmem [resolvable:$true] %s223
          %226 = dma.vmem_to_smem %s224, 16, [#allocation7], [#allocation8]
        $region20: #{tpu_custom_call.1} parent=11 // pred_fallthru
          _
      $region12: #{tpu_custom_call.1} parent=5 // pred_fallthru
        _
      %p227 = scmp.lt.s32.totalorder %s20, 2
      // Predicated region
      $region21: #{tpu_custom_call.1} parent=5 // pred_check
        %p228 = pneg %p227
      $region22: #{tpu_custom_call.1} parent=5 // pred_check_branch
        %230 = sbr.rel (%p228) target = $region24
      $region23: #{tpu_custom_call.1} parent=5 // pred_region
        // Predicated region
        $region25: #{tpu_custom_call.1} parent=23 // pred_check
          %p231 = pneg %p40
        $region26: #{tpu_custom_call.1} parent=23 // pred_check_branch
          %233 = sbr.rel (%p231) target = $region28
        $region27: #{tpu_custom_call.1} parent=23 // pred_region
          %p234 = scmp.lt.s32.totalorder %s20, 1
          %s235 = scalar_select %p234, %s20, 1
          %s236 = smul.addr %s235, 8
          %s237 = scalar_lea.vmem %s0, %s236
        $region28: #{tpu_custom_call.1} parent=23 // pred_fallthru
          _
        // Predicated region
        $region29: #{tpu_custom_call.1} parent=23 // pred_check
          %p238 = pneg %p66
        $region30: #{tpu_custom_call.1} parent=23 // pred_check_branch
          %240 = sbr.rel (%p238) target = $region32
        $region31: #{tpu_custom_call.1} parent=23 // pred_region
          %s241 = sand.u32 %s56, 1
          %s242 = scalar_lea.sflag [#allocation3], %s241
          %s243 = sand.u32 %s56, 1
          %s244 = smul.addr %s243, 8
          %s245 = scalar_lea.vmem [#allocation2], %s244
          %247 = vsyncadd %s242, 0
          %s248 = smul.addr %s20, 8
          %s249 = scalar_lea.hbm %s1, %s248
          %s251 = sshll.u32 %s249, 4
          %s252 = int_to_ptr.hbm [resolvable:$true] %s251
          %s253 = sshll.u32 %s245, 4
          %s254 = int_to_ptr.vmem [resolvable:$true] %s253
          %256 = dma.hbm_to_vmem [thread:$0]  %s252, 128, %s254, %s242
        $region32: #{tpu_custom_call.1} parent=23 // pred_fallthru
          _
        // Predicated region
        $region33: #{tpu_custom_call.1} parent=23 // pred_check
          %p257 = pneg %p92
        $region34: #{tpu_custom_call.1} parent=23 // pred_check_branch
          %259 = sbr.rel (%p257) target = $region36
        $region35: #{tpu_custom_call.1} parent=23 // pred_region
          %p260 = scmp.lt.s32.totalorder %s20, 1
          %s261 = scalar_select %p260, %s20, 1
          %s262 = smul.addr %s261, 8
          %s263 = scalar_lea.vmem %s2, %s262
        $region36: #{tpu_custom_call.1} parent=23 // pred_fallthru
          _
        // Predicated region
        $region37: #{tpu_custom_call.1} parent=23 // pred_check
          %p264 = pneg %p118
        $region38: #{tpu_custom_call.1} parent=23 // pred_check_branch
          %266 = sbr.rel (%p264) target = $region40
        $region39: #{tpu_custom_call.1} parent=23 // pred_region
          %p267 = scmp.lt.s32.totalorder %s20, 1
          %s268 = scalar_select %p267, %s20, 1
          %s269 = scalar_lea.vmem %s3, %s268
        $region40: #{tpu_custom_call.1} parent=23 // pred_fallthru
          _
      $region24: #{tpu_custom_call.1} parent=5 // pred_fallthru
        _
      %p270 = scmp.le.s32.totalorder 1, %s20
      %p271 = scmp.lt.s32.totalorder %s20, 3
      %p272 = pnand %p270, %p271
      %p273 = pneg %p272
      // Predicated region
      $region41: #{tpu_custom_call.1} parent=5 // pred_check
        _
      $region42: #{tpu_custom_call.1} parent=5 // pred_check_branch
        %275 = sbr.rel (%p272) target = $region44
      $region43: #{tpu_custom_call.1} parent=5 // pred_region
        %s276 = ssub.s32 %s20, 1
        %s277 = sand.u32 %s59, 1
        %s278 = scalar_lea.sflag [#allocation3], %s277
        %s279 = sand.u32 %s59, 1
        %s280 = smul.addr %s279, 8
        %s281 = scalar_lea.vmem [#allocation2], %s280
        // Predicated region
        $region45: #{tpu_custom_call.1} parent=43 // pred_check
          %p282 = pneg %p72
        $region46: #{tpu_custom_call.1} parent=43 // pred_check_branch
          %284 = sbr.rel (%p282) target = $region48
        $region47: #{tpu_custom_call.1} parent=43 // pred_region
          %286 = dma.done %s278, 128
        $region48: #{tpu_custom_call.1} parent=43 // pred_fallthru
          _
        // Predicated region
        $region49: #{tpu_custom_call.1} parent=43 // pred_check
          %p287 = pneg %p145
        $region50: #{tpu_custom_call.1} parent=43 // pred_check_branch
          %289 = sbr.rel (%p287) target = $region52
        $region51: #{tpu_custom_call.1} parent=43 // pred_region
          %291 = dma.done [#allocation5], 16
        $region52: #{tpu_custom_call.1} parent=43 // pred_fallthru
          _
        // Predicated region
        $region53: #{tpu_custom_call.1} parent=43 // pred_check
          %p292 = pneg %p166
        $region54: #{tpu_custom_call.1} parent=43 // pred_check_branch
          %294 = sbr.rel (%p292) target = $region56
        $region55: #{tpu_custom_call.1} parent=43 // pred_region
          %296 = dma.done [#allocation8], 16
        $region56: #{tpu_custom_call.1} parent=43 // pred_fallthru
          _
        %297 = sfence
        %p298 = scmp.lt.s32.totalorder %s25, 1
        %s299 = scalar_select %p298, %s25, 1
        %s300 = smul.addr %s299, 8
        %s301 = scalar_lea.vmem %s0, %s300
        %p302 = pneg %p46
        %p303 = pneg %p43
        %s304 = sand.u32 %s59, 1
        %s305 = scalar_lea.sflag [#allocation3], %s304
        %s306 = sand.u32 %s59, 1
        %s307 = smul.addr %s306, 8
        %s308 = scalar_lea.vmem [#allocation2], %s307
        %p309 = pneg %p72
        %p310 = pneg %p69
        %p311 = scmp.lt.s32.totalorder %s25, 1
        %s312 = scalar_select %p311, %s25, 1
        %s313 = smul.addr %s312, 8
        %s314 = scalar_lea.vmem %s2, %s313
        %p315 = pneg %p98
        %p316 = pneg %p95
        %p317 = scmp.lt.s32.totalorder %s25, 1
        %s318 = scalar_select %p317, %s25, 1
        %s319 = scalar_lea.vmem %s3, %s318
        %p320 = pneg %p124
        %p321 = pneg %p121
        %p322 = pneg %p145
        %p323 = pneg %p142
        %p324 = pneg %p166
        %p325 = pneg %p163
        %p326 = pneg %p192
        %p327 = pneg %p189
        %s328 = sand.u32 %s179, 1
        %s329 = scalar_lea.sflag [#allocation4], %s328
        %s330 = sand.u32 %s179, 1
        %s331 = smul.addr %s330, 2
        %s332 = scalar_lea.vmem [#allocation9], %s331
        %p333 = scmp.lt.s32.totalorder %s25, 1
        %s334 = scalar_select %p333, %s25, 1
        %s335 = smul.addr %s334, 8
        %s336 = scalar_lea.vmem %s0, %s335
        %p337 = scmp.lt.s32.totalorder %s25, 1
        %s338 = scalar_select %p337, %s25, 1
        %s339 = smul.addr %s338, 8
        %s340 = scalar_lea.vmem %s2, %s339
        %p341 = scmp.lt.s32.totalorder %s25, 1
        %s342 = scalar_select %p341, %s25, 1
        %s343 = scalar_lea.vmem %s3, %s342
        %v346 = vld [vmem:[%s336] sm:$0xff]
        %v347 = vld [vmem:[%s281] sm:$0xff]
        %vm348 = vcmask 261120
        %v350 = vsel %vm348, %v346, 0
        %v353 = vsel %vm348, %v347, 0
        %355 = vmatpush.xpose.msra.mxu0 0.0
        %356 = vmatpush.xpose.msra.mxu0 0.0
        %357 = vmatpush.xpose.msra.mxu0 0.0
        %358 = vmatpush.xpose.msra.mxu0 0.0
        %359 = vmatpush.xpose.msra.mxu0 0.0
        %360 = vmatpush.xpose.msra.mxu0 0.0
        %361 = vmatpush.xpose.msra.mxu0 0.0
        %362 = vmatpush.xpose.msra.mxu0 0.0
        %363 = vmatpush.xpose.msra.mxu0 0.0
        %364 = vmatpush.xpose.msra.mxu0 0.0
        %365 = vmatpush.xpose.msra.mxu0 0.0
        %366 = vmatpush.xpose.msra.mxu0 0.0
        %367 = vmatpush.xpose.msra.mxu0 0.0
        %368 = vmatpush.xpose.msra.mxu0 0.0
        %369 = vmatpush.xpose.msra.mxu0 0.0
        %370 = vmatpush.xpose.msra.mxu0 %v353
        %371 = vmatmul.f32.gmra.mxu0 %v350
        %v372 = vpop.f32.mrf.mxu0
        %v373 = vadd.f32 0.0, %v372
        %374 = vdwg.mxu0
        %v375 = vld [vmem:[%s343] sm:$0x1]
        %v377 = vperm.slane %v375, 0
        %v379 = vadd.f32 %v373, %v377
        %v380 = vld [vmem:[%s340] sm:$0xff]
        %382 = vset.pattern.permute.xlu0 0
        %383 = vperm.xlu0 %382, %v380
        %v384 = vpop.permute.xlu0 %383
        %v386 = vadd.f32 %v373, %v384
        %vm387 = vcmask 64512
        %v388 = vsel %vm387, %v379, -inf
        %389 = vmax.xlane.f32.xlu0 %v388
        %v390 = vpop.xlane.xlu0 %389
        %v391 = vsel %vm387, %v386, -inf
        %v392 = vrot.slane %v391, 4
        %v393 = vmax.f32 %v391, %v392
        %v394 = vrot.slane %v393, 2
        %v395 = vmax.f32 %v393, %v394
        %v396 = vrot.slane %v395, 1
        %v397 = vmax.f32 %v395, %v396
        %v398 = vsub.f32 %v379, %v390
        %v399 = vsub.f32 %v386, %v397
        %v400 = vmul.f32 %v398, 1.442695
        %v401 = vpow.pop %v400
        %v402 = vmul.f32 %v399, 1.442695
        %v403 = vpow.pop %v402
        %v404 = vsel %vm387, %v401, 0.0
        %405 = vadd.xlane.f32.xlu0 %v404
        %v406 = vpop.xlane.xlu0 %405
        %v407 = vrcp.pop %v406
        %v408 = vmul.f32 %v406, %v407
        %v409 = vsub.f32 1.0, %v408
        %v410 = vmul.f32 %v407, %v409
        %v411 = vadd.f32 %v407, %v410
        %vm412 = vweird.f32 %v406
        %vm413 = vweird.f32 %v407
        %vm414 = vmor %vm412, %vm413
        %v415 = vsel %vm414, %v407, %v411
        %v416 = vand.u32 2147483647, %v406
        %vm417 = vcmp.eq.f32.partialorder %v416, 8.507059e+37
        %v418 = vand.u32 %v406, 2147483648
        %v419 = vor.u32 1.1754944e-38, %v418
        %v420 = vsel %vm417, %v419, %v415
        %v421 = vmul.f32 %v401, %v420
        %v422 = vsel %vm387, %v403, 0.0
        %v423 = vrot.slane %v422, 4
        %v424 = vadd.f32 %v422, %v423
        %v425 = vrot.slane %v424, 2
        %v426 = vadd.f32 %v424, %v425
        %v427 = vrot.slane %v426, 1
        %v428 = vadd.f32 %v426, %v427
        %v429 = vrcp.pop %v428
        %v430 = vmul.f32 %v428, %v429
        %v431 = vsub.f32 1.0, %v430
        %v432 = vmul.f32 %v429, %v431
        %v433 = vadd.f32 %v429, %v432
        %vm434 = vweird.f32 %v428
        %vm435 = vweird.f32 %v429
        %vm436 = vmor %vm434, %vm435
        %v437 = vsel %vm436, %v429, %v433
        %v438 = vand.u32 2147483647, %v428
        %vm439 = vcmp.eq.f32.partialorder %v438, 8.507059e+37
        %v440 = vand.u32 %v428, 2147483648
        %v441 = vor.u32 1.1754944e-38, %v440
        %v442 = vsel %vm439, %v441, %v437
        %v443 = vmul.f32 %v403, %v442
        %vm444 = vcmp.gt.f32.partialorder %v421, 0.001
        %vm445 = vcmp.gt.f32.partialorder %v443, 0.001
        %vm446 = vmand %vm444, %vm445
        %vm447 = vmpackc.low %vm446, %vm446
        %v448 = vsel %vm447, 16711935, 0
        %v449 = vsel %vm447, 16711935, 0
        %v450 = vpack.c.b8 %v449, %v448
        %vm451 = vnez %v450
        %v452 = vsel %vm451, 16843009, 0
        %vm453 = vcmask 58368
        %454 = vst.msk [vmem:[%s332] sm:$0x3] %vm453, %v452
        %s455 = sand.u32 %s179, 1
        %s456 = scalar_lea.sflag [#allocation4], %s455
        %s457 = sand.u32 %s179, 1
        %s458 = smul.addr %s457, 2
        %s459 = scalar_lea.vmem [#allocation9], %s458
        // Predicated region
        $region57: #{tpu_custom_call.1} parent=43 // pred_check
          %p460 = pneg %p189
        $region58: #{tpu_custom_call.1} parent=43 // pred_check_branch
          %462 = sbr.rel (%p460) target = $region60
        $region59: #{tpu_custom_call.1} parent=43 // pred_region
          %464 = vsyncadd %s456, 0
          %s465 = smul.addr %s25, 2
          %s466 = scalar_lea.hbm %s6, %s465
          %s468 = sshll.u32 %s459, 4
          %s469 = int_to_ptr.vmem [resolvable:$true] %s468
          %s470 = sshll.u32 %s466, 4
          %s471 = int_to_ptr.hbm [resolvable:$true] %s470
          %473 = dma.vmem_to_hbm [thread:$0]  %s469, 32, %s471, %s456
        $region60: #{tpu_custom_call.1} parent=43 // pred_fallthru
          _
      $region44: #{tpu_custom_call.1} parent=5 // pred_fallthru
        _
      %p474 = scmp.le.s32.totalorder 2, %s20
      // Predicated region
      $region61: #{tpu_custom_call.1} parent=5 // pred_check
        %p475 = pneg %p474
      $region62: #{tpu_custom_call.1} parent=5 // pred_check_branch
        %477 = sbr.rel (%p475) target = $region64
      $region63: #{tpu_custom_call.1} parent=5 // pred_region
        %s478 = ssub.s32 %s20, 2
        // Predicated region
        $region65: #{tpu_custom_call.1} parent=63 // pred_check
          %p479 = pneg %p195
        $region66: #{tpu_custom_call.1} parent=63 // pred_check_branch
          %481 = sbr.rel (%p479) target = $region68
        $region67: #{tpu_custom_call.1} parent=63 // pred_region
          %s482 = sand.u32 %s180, 1
          %s483 = scalar_lea.sflag [#allocation4], %s482
          %s484 = sand.u32 %s180, 1
          %s485 = smul.addr %s484, 2
          %s486 = scalar_lea.vmem [#allocation9], %s485
          %488 = dma.done %s483, 32
        $region68: #{tpu_custom_call.1} parent=63 // pred_fallthru
          _
      $region64: #{tpu_custom_call.1} parent=5 // pred_fallthru
        _
    $region6: #{tpu_custom_call.1} parent=1 // loop_footer
      %s24 = sadd.s32 1, %s20
    $region7: #{tpu_custom_call.1} parent=1 // loop_footer_branch
      %19 = sbr.rel target = $region3
    $region8: #{tpu_custom_call.1} parent=1 // loop_exit
      _
    %489 = vsyncpa [#allocation3], 1
    %s490 = scalar_lea.sflag [#allocation3], 1
    %491 = vsyncpa %s490, 1
    %492 = vsyncpa [#allocation4], 1
    %s493 = scalar_lea.sflag [#allocation4], 1
    %494 = vsyncpa %s493, 1
    %495 = vsyncpa [#allocation5], 1
    %s496 = scalar_lea.sflag [#allocation5], 1
    %497 = vsyncpa %s496, 1
    %498 = vsyncpa [#allocation8], 1

</llo_original>
